<compile_context>
chip_gen: v7x
topology: tpu7x:2x2x1
jax: 0.10.0
libtpu: 0.0.40
codegen_flags: <defaults>
</compile_context>

<pallas_src>
import math
import functools

import jax
import jax.numpy as jnp
from jax.experimental import pallas as pl
from jax.experimental.pallas import tpu as pltpu


def _round_up(x, m):
    return ((x + m - 1) // m) * m


def _rotate_kernel(h_re, h_im, l_re, l_im, t_re, t_im,
                   ch_re, ch_im, ct_re, ct_im,
                   loss_ref, e_ref, ce_ref, *, margin):
    def energy(hr, hi, lr, li, tr, ti):
        re = hr * lr - hi * li - tr
        im = hr * li + hi * lr - ti
        return jnp.sqrt(jnp.sum(re * re + im * im, axis=-1, keepdims=True))

    lr = l_re[...]
    li = l_im[...]
    E = energy(h_re[...], h_im[...], lr, li, t_re[...], t_im[...])
    cE = energy(ch_re[...], ch_im[...], lr, li, ct_re[...], ct_im[...])

    e_ref[...] = E
    ce_ref[...] = cE
    # MarginRankingLoss(reduction='none') with target = -1:
    #   loss = max(0, -y*(E - cE) + margin) = max(0, (E - cE) + margin)
    loss_ref[...] = jnp.maximum(E - cE + jnp.float32(margin), 0.0)


def rotate_forward(params, correct, corrupted, *, margin=1.0, block_b=None):
    """Reproduces Model.forward: returns (loss, E, cE), each shape (B,)."""
    obj_re, obj_im, rel_re, rel_im = params
    B = correct.shape[0]
    D = obj_re.shape[1]

    # Pick the batch tile: ~16 MiB budget for the 10 double-buffered f32
    # input tiles, capped at 1024 rows, floor/multiple of 8 (sublane align).
    if block_b is None:
        per_row_bytes = 2 * 10 * D * 4
        block_b = (16 * 1024 * 1024) // per_row_bytes
        block_b = max(8, min(1024, (block_b // 8) * 8))
    block_b = max(8, _round_up(min(block_b, _round_up(B, 8)), 8))
    Bp = _round_up(B, block_b)

    # Pad the (tiny) index vectors, not the gathered activations -> the
    # gathers below directly produce (Bp, D) arrays with no extra HBM pass.
    pad_idx = lambda idx: jnp.pad(idx, (0, Bp - B))
    h, l, t = (pad_idx(correct[:, 0]), pad_idx(correct[:, 1]),
               pad_idx(correct[:, 2]))
    ch, ct = pad_idx(corrupted[:, 0]), pad_idx(corrupted[:, 2])

    take = lambda tbl, idx: jnp.take(tbl, idx, axis=0)
    # TODO(synk): remove the HBM round-trip of these gathers (allow_input_fusion
    # or an in-kernel DMA gather from tables kept at memory_space=pl.ANY).
    inputs = (
        take(obj_re, h), take(obj_im, h),
        take(rel_re, l), take(rel_im, l),
        take(obj_re, t), take(obj_im, t),
        take(obj_re, ch), take(obj_im, ch),
        take(obj_re, ct), take(obj_im, ct),
    )

    grid = (Bp // block_b,)
    # Last block dim == full array dim (D), so no lane padding is required.
    emb_spec = pl.BlockSpec((block_b, D), lambda i: (i, 0))
    out_spec = pl.BlockSpec((block_b, 1), lambda i: (i, 0))

    loss, E, cE = pl.pallas_call(
        functools.partial(_rotate_kernel, margin=float(margin)),
        grid=grid,
        in_specs=[emb_spec] * 10,
        out_specs=[out_spec, out_spec, out_spec],
        out_shape=(
            jax.ShapeDtypeStruct((Bp, 1), jnp.float32),
            jax.ShapeDtypeStruct((Bp, 1), jnp.float32),
            jax.ShapeDtypeStruct((Bp, 1), jnp.float32),
        ),
        compiler_params=pltpu.CompilerParams(
            dimension_semantics=("parallel",),
            vmem_limit_bytes=32 * 1024 * 1024,
        ),
    )(*inputs)

    return loss[:B, 0], E[:B, 0], cE[:B, 0]


def init_params(key, n_objects, n_relationships, emb_dim):
    """Deterministic uniform init matching the PyTorch module's __init__."""
    bound = 6.0 / math.sqrt(emb_dim)
    k0, k1, k2, k3 = jax.random.split(key, 4)
    u = lambda k, n: jax.random.uniform(
        k, (n, emb_dim), dtype=jnp.float32, minval=-bound, maxval=bound)
    obj_re = u(k0, n_objects)
    obj_im = u(k1, n_objects)
    rel_re = u(k2, n_relationships)
    rel_im = u(k3, n_relationships)
    return obj_re, obj_im, rel_re, rel_im


if __name__ == "__main__":
    n_objects, n_relationships, emb_dim = 16, 4, 32
    B = 20  # not a multiple of the batch tile -> exercises padding + trim
    key = jax.random.PRNGKey(0)
    kp, k_h, k_r, k_t, k_ch, k_ct = jax.random.split(key, 6)

    params = init_params(kp, n_objects, n_relationships, emb_dim)

    # correct / corrupted triples: (head, relation, tail)
    heads = jax.random.randint(k_h, (B,), 0, n_objects)
    rels = jax.random.randint(k_r, (B,), 0, n_relationships)
    tails = jax.random.randint(k_t, (B,), 0, n_objects)
    correct = jnp.stack([heads, rels, tails], axis=1).astype(jnp.int32)

    c_heads = jax.random.randint(k_ch, (B,), 0, n_objects)
    c_tails = jax.random.randint(k_ct, (B,), 0, n_objects)
    corrupted = jnp.stack([c_heads, rels, c_tails], axis=1).astype(jnp.int32)

    # block_b=8 forces a multi-tile grid even at this small demo batch.
    loss, E, cE = rotate_forward(params, correct, corrupted, margin=1.0,
                                 block_b=8)
    jax.block_until_ready((loss, E, cE))

    # Pure-JAX reference check.
    def ref_energy(hr, hi, lr, li, tr, ti):
        re = hr * lr - hi * li - tr
        im = hr * li + hi * lr - ti
        return jnp.sqrt(jnp.sum(re * re + im * im, axis=-1))

    obj_re, obj_im, rel_re, rel_im = params
    h, l, t = correct[:, 0], correct[:, 1], correct[:, 2]
    ch, ct = corrupted[:, 0], corrupted[:, 2]
    E_ref = ref_energy(obj_re[h], obj_im[h], rel_re[l], rel_im[l],
                       obj_re[t], obj_im[t])
    cE_ref = ref_energy(obj_re[ch], obj_im[ch], rel_re[l], rel_im[l],
                        obj_re[ct], obj_im[ct])
    loss_ref = jnp.maximum(E_ref - cE_ref + 1.0, 0.0)

    assert jnp.allclose(E, E_ref, atol=1e-5, rtol=1e-5)
    assert jnp.allclose(cE, cE_ref, atol=1e-5, rtol=1e-5)
    assert jnp.allclose(loss, loss_ref, atol=1e-5, rtol=1e-5)

    print("KERNEL_OK")
</pallas_src>

<mosaic_0001>
module attributes {stable_mosaic.version = 11 : i64} {
  func.func @_rotate_kernel(%arg0: i32, %arg1: memref<8x32xf32, #tpu.memory_space<vmem>>, %arg2: memref<8x32xf32, #tpu.memory_space<vmem>>, %arg3: memref<8x32xf32, #tpu.memory_space<vmem>>, %arg4: memref<8x32xf32, #tpu.memory_space<vmem>>, %arg5: memref<8x32xf32, #tpu.memory_space<vmem>>, %arg6: memref<8x32xf32, #tpu.memory_space<vmem>>, %arg7: memref<8x32xf32, #tpu.memory_space<vmem>>, %arg8: memref<8x32xf32, #tpu.memory_space<vmem>>, %arg9: memref<8x32xf32, #tpu.memory_space<vmem>>, %arg10: memref<8x32xf32, #tpu.memory_space<vmem>>, %arg11: memref<8x1xf32, #tpu.memory_space<vmem>>, %arg12: memref<8x1xf32, #tpu.memory_space<vmem>>, %arg13: memref<8x1xf32, #tpu.memory_space<vmem>>) attributes {dimension_semantics = [#tpu.dimension_semantics<parallel>], iteration_bounds = array<i64: 3>, scalar_prefetch = 0 : i64, scratch_operands = 0 : i64, tpu.core_type = #tpu.core_type<tc>, window_params = [{transform_indices = @transform_0, window_bounds = array<i64: 8, 32>}, {transform_indices = @transform_1, window_bounds = array<i64: 8, 32>}, {transform_indices = @transform_2, window_bounds = array<i64: 8, 32>}, {transform_indices = @transform_3, window_bounds = array<i64: 8, 32>}, {transform_indices = @transform_4, window_bounds = array<i64: 8, 32>}, {transform_indices = @transform_5, window_bounds = array<i64: 8, 32>}, {transform_indices = @transform_6, window_bounds = array<i64: 8, 32>}, {transform_indices = @transform_7, window_bounds = array<i64: 8, 32>}, {transform_indices = @transform_8, window_bounds = array<i64: 8, 32>}, {transform_indices = @transform_9, window_bounds = array<i64: 8, 32>}, {transform_indices = @transform_10, window_bounds = array<i64: 8, 1>}, {transform_indices = @transform_11, window_bounds = array<i64: 8, 1>}, {transform_indices = @transform_12, window_bounds = array<i64: 8, 1>}]} {
    %c0 = arith.constant 0 : index
    %c0_0 = arith.constant 0 : index
    %0 = vector.load %arg3[%c0, %c0_0] : memref<8x32xf32, #tpu.memory_space<vmem>>, vector<8x32xf32>
    %c0_1 = arith.constant 0 : index
    %c0_2 = arith.constant 0 : index
    %1 = vector.load %arg4[%c0_1, %c0_2] : memref<8x32xf32, #tpu.memory_space<vmem>>, vector<8x32xf32>
    %c0_3 = arith.constant 0 : index
    %c0_4 = arith.constant 0 : index
    %2 = vector.load %arg1[%c0_3, %c0_4] : memref<8x32xf32, #tpu.memory_space<vmem>>, vector<8x32xf32>
    %c0_5 = arith.constant 0 : index
    %c0_6 = arith.constant 0 : index
    %3 = vector.load %arg2[%c0_5, %c0_6] : memref<8x32xf32, #tpu.memory_space<vmem>>, vector<8x32xf32>
    %c0_7 = arith.constant 0 : index
    %c0_8 = arith.constant 0 : index
    %4 = vector.load %arg5[%c0_7, %c0_8] : memref<8x32xf32, #tpu.memory_space<vmem>>, vector<8x32xf32>
    %c0_9 = arith.constant 0 : index
    %c0_10 = arith.constant 0 : index
    %5 = vector.load %arg6[%c0_9, %c0_10] : memref<8x32xf32, #tpu.memory_space<vmem>>, vector<8x32xf32>
    %6 = arith.mulf %2, %0 : vector<8x32xf32>
    %7 = arith.mulf %3, %1 : vector<8x32xf32>
    %8 = arith.subf %6, %7 : vector<8x32xf32>
    %9 = arith.subf %8, %4 : vector<8x32xf32>
    %10 = arith.mulf %2, %1 : vector<8x32xf32>
    %11 = arith.mulf %3, %0 : vector<8x32xf32>
    %12 = arith.addf %10, %11 : vector<8x32xf32>
    %13 = arith.subf %12, %5 : vector<8x32xf32>
    %14 = arith.mulf %9, %9 : vector<8x32xf32>
    %15 = arith.mulf %13, %13 : vector<8x32xf32>
    %16 = arith.addf %14, %15 : vector<8x32xf32>
    %cst = arith.constant dense<0.000000e+00> : vector<8xf32>
    %17 = vector.multi_reduction <add>, %16, %cst [1] : vector<8x32xf32> to vector<8xf32>
    %18 = vector.shape_cast %17 : vector<8xf32> to vector<8x1xf32>
    %19 = math.sqrt %18 : vector<8x1xf32>
    %c0_11 = arith.constant 0 : index
    %c0_12 = arith.constant 0 : index
    %20 = vector.load %arg7[%c0_11, %c0_12] : memref<8x32xf32, #tpu.memory_space<vmem>>, vector<8x32xf32>
    %c0_13 = arith.constant 0 : index
    %c0_14 = arith.constant 0 : index
    %21 = vector.load %arg8[%c0_13, %c0_14] : memref<8x32xf32, #tpu.memory_space<vmem>>, vector<8x32xf32>
    %c0_15 = arith.constant 0 : index
    %c0_16 = arith.constant 0 : index
    %22 = vector.load %arg9[%c0_15, %c0_16] : memref<8x32xf32, #tpu.memory_space<vmem>>, vector<8x32xf32>
    %c0_17 = arith.constant 0 : index
    %c0_18 = arith.constant 0 : index
    %23 = vector.load %arg10[%c0_17, %c0_18] : memref<8x32xf32, #tpu.memory_space<vmem>>, vector<8x32xf32>
    %24 = arith.mulf %20, %0 : vector<8x32xf32>
    %25 = arith.mulf %21, %1 : vector<8x32xf32>
    %26 = arith.subf %24, %25 : vector<8x32xf32>
    %27 = arith.subf %26, %22 : vector<8x32xf32>
    %28 = arith.mulf %20, %1 : vector<8x32xf32>
    %29 = arith.mulf %21, %0 : vector<8x32xf32>
    %30 = arith.addf %28, %29 : vector<8x32xf32>
    %31 = arith.subf %30, %23 : vector<8x32xf32>
    %32 = arith.mulf %27, %27 : vector<8x32xf32>
    %33 = arith.mulf %31, %31 : vector<8x32xf32>
    %34 = arith.addf %32, %33 : vector<8x32xf32>
    %cst_19 = arith.constant dense<0.000000e+00> : vector<8xf32>
    %35 = vector.multi_reduction <add>, %34, %cst_19 [1] : vector<8x32xf32> to vector<8xf32>
    %36 = vector.shape_cast %35 : vector<8xf32> to vector<8x1xf32>
    %37 = math.sqrt %36 : vector<8x1xf32>
    %c0_20 = arith.constant 0 : index
    %c0_21 = arith.constant 0 : index
    %38 = vector.load %arg12[%c0_20, %c0_21] : memref<8x1xf32, #tpu.memory_space<vmem>>, vector<8x1xf32>
    tpu.vector_store %arg12[%c0_20, %c0_21], %19 {strides = array<i32>} : memref<8x1xf32, #tpu.memory_space<vmem>>, vector<8x1xf32>,
    %c0_22 = arith.constant 0 : index
    %c0_23 = arith.constant 0 : index
    %39 = vector.load %arg13[%c0_22, %c0_23] : memref<8x1xf32, #tpu.memory_space<vmem>>, vector<8x1xf32>
    tpu.vector_store %arg13[%c0_22, %c0_23], %37 {strides = array<i32>} : memref<8x1xf32, #tpu.memory_space<vmem>>, vector<8x1xf32>,
    %40 = arith.subf %19, %37 : vector<8x1xf32>
    %cst_24 = arith.constant 1.000000e+00 : f32
    %41 = vector.broadcast %cst_24 : f32 to vector<8x1xf32>
    %42 = arith.addf %40, %41 : vector<8x1xf32>
    %cst_25 = arith.constant 0.000000e+00 : f32
    %43 = vector.broadcast %cst_25 : f32 to vector<8x1xf32>
    %44 = arith.maximumf %42, %43 : vector<8x1xf32>
    %c0_26 = arith.constant 0 : index
    %c0_27 = arith.constant 0 : index
    %45 = vector.load %arg11[%c0_26, %c0_27] : memref<8x1xf32, #tpu.memory_space<vmem>>, vector<8x1xf32>
    tpu.vector_store %arg11[%c0_26, %c0_27], %44 {strides = array<i32>} : memref<8x1xf32, #tpu.memory_space<vmem>>, vector<8x1xf32>,
    return
  }
  func.func @transform_0(%arg0: i32) -> (i32, i32) {
    %c0_i32 = arith.constant 0 : i32
    %c0_i32_0 = arith.constant 0 : i32
    return %arg0, %c0_i32 : i32, i32
  }
  func.func @transform_1(%arg0: i32) -> (i32, i32) {
    %c0_i32 = arith.constant 0 : i32
    %c0_i32_0 = arith.constant 0 : i32
    return %arg0, %c0_i32 : i32, i32
  }
  func.func @transform_2(%arg0: i32) -> (i32, i32) {
    %c0_i32 = arith.constant 0 : i32
    %c0_i32_0 = arith.constant 0 : i32
    return %arg0, %c0_i32 : i32, i32
  }
  func.func @transform_3(%arg0: i32) -> (i32, i32) {
    %c0_i32 = arith.constant 0 : i32
    %c0_i32_0 = arith.constant 0 : i32
    return %arg0, %c0_i32 : i32, i32
  }
  func.func @transform_4(%arg0: i32) -> (i32, i32) {
    %c0_i32 = arith.constant 0 : i32
    %c0_i32_0 = arith.constant 0 : i32
    return %arg0, %c0_i32 : i32, i32
  }
  func.func @transform_5(%arg0: i32) -> (i32, i32) {
    %c0_i32 = arith.constant 0 : i32
    %c0_i32_0 = arith.constant 0 : i32
    return %arg0, %c0_i32 : i32, i32
  }
  func.func @transform_6(%arg0: i32) -> (i32, i32) {
    %c0_i32 = arith.constant 0 : i32
    %c0_i32_0 = arith.constant 0 : i32
    return %arg0, %c0_i32 : i32, i32
  }
  func.func @transform_7(%arg0: i32) -> (i32, i32) {
    %c0_i32 = arith.constant 0 : i32
    %c0_i32_0 = arith.constant 0 : i32
    return %arg0, %c0_i32 : i32, i32
  }
  func.func @transform_8(%arg0: i32) -> (i32, i32) {
    %c0_i32 = arith.constant 0 : i32
    %c0_i32_0 = arith.constant 0 : i32
    return %arg0, %c0_i32 : i32, i32
  }
  func.func @transform_9(%arg0: i32) -> (i32, i32) {
    %c0_i32 = arith.constant 0 : i32
    %c0_i32_0 = arith.constant 0 : i32
    return %arg0, %c0_i32 : i32, i32
  }
  func.func @transform_10(%arg0: i32) -> (i32, i32) {
    %c0_i32 = arith.constant 0 : i32
    %c0_i32_0 = arith.constant 0 : i32
    return %arg0, %c0_i32 : i32, i32
  }
  func.func @transform_11(%arg0: i32) -> (i32, i32) {
    %c0_i32 = arith.constant 0 : i32
    %c0_i32_0 = arith.constant 0 : i32
    return %arg0, %c0_i32 : i32, i32
  }
  func.func @transform_12(%arg0: i32) -> (i32, i32) {
    %c0_i32 = arith.constant 0 : i32
    %c0_i32_0 = arith.constant 0 : i32
    return %arg0, %c0_i32 : i32, i32
  }
}

</mosaic_0001>

<llo_original>
// kernel: tpu_custom_call.1
$region0: #{tpu_custom_call.1}
  #allocation0 [shape = 'u32[]', space=smem, size = 0x4, offset = 0x4, fixed_abs, tag = 'smem constant byte address 0x4 - core index']
  #allocation1 [shape = 'u32[144,128]{1,0:T(1,128)}', space=vmem, size = 0x12000, scoped, tag = 'internal scratch']
  %s0 = inlined_call_operand.hbm [shape: f32[24,32], index: 0, kind: input, shape index: {}]
  %s1 = inlined_call_operand.hbm [shape: f32[24,32], index: 1, kind: input, shape index: {}]
  %s2 = inlined_call_operand.hbm [shape: f32[24,32], index: 2, kind: input, shape index: {}]
  %s3 = inlined_call_operand.hbm [shape: f32[24,32], index: 3, kind: input, shape index: {}]
  %s4 = inlined_call_operand.hbm [shape: f32[24,32], index: 4, kind: input, shape index: {}]
  %s5 = inlined_call_operand.hbm [shape: f32[24,32], index: 5, kind: input, shape index: {}]
  %s6 = inlined_call_operand.hbm [shape: f32[24,32], index: 6, kind: input, shape index: {}]
  %s7 = inlined_call_operand.vmem [shape: f32[24,32], index: 7, kind: input, shape index: {}]
  %s8 = inlined_call_operand.hbm [shape: f32[24,32], index: 8, kind: input, shape index: {}]
  %s9 = inlined_call_operand.hbm [shape: f32[24,32], index: 9, kind: input, shape index: {}]
  %s10 = inlined_call_operand.vmem [shape: f32[24,1], index: 10, kind: output, shape index: {0}]
  %s11 = inlined_call_operand.vmem [shape: f32[24,1], index: 11, kind: output, shape index: {1}]
  %s12 = inlined_call_operand.vmem [shape: f32[24,1], index: 12, kind: output, shape index: {2}]
  %13 = xla_tuple %s10, %s11, %s12
  %s14 = sld [smem:[#allocation0]]
  $region125: #{tpu_custom_call.1} parent=0
    _
  %s16 = ssub.s32 1, %s14
  %s17 = scalar_select 0, %s16, %s14
  $region1: #{tpu_custom_call.1} parent=0
    #allocation2 [shape = 'u8[8192]{0}', space=vmem, size = 0x2000, scoped, tag = 'input window, operand 0']
    #allocation3 [shape = 's32[2]{0}', space=sflag, size = 0x8, scoped, tag = 'scoped memory for tpu_custom_call.1']
    #allocation4 [shape = 'u8[8192]{0}', space=vmem, size = 0x2000, scoped, tag = 'input window, operand 1']
    #allocation5 [shape = 's32[2]{0}', space=sflag, size = 0x8, scoped, tag = 'scoped memory for tpu_custom_call.1']
    #allocation6 [shape = 'u8[8192]{0}', space=vmem, size = 0x2000, scoped, tag = 'input window, operand 2']
    #allocation7 [shape = 'u8[8192]{0}', space=vmem, size = 0x2000, scoped, tag = 'input window, operand 3']
    #allocation8 [shape = 's32[2]{0}', space=sflag, size = 0x8, scoped, tag = 'scoped memory for tpu_custom_call.1']
    #allocation9 [shape = 'u8[8192]{0}', space=vmem, size = 0x2000, scoped, tag = 'input window, operand 4']
    #allocation10 [shape = 'u8[8192]{0}', space=vmem, size = 0x2000, scoped, tag = 'input window, operand 5']
    #allocation11 [shape = 's32[2]{0}', space=sflag, size = 0x8, scoped, tag = 'scoped memory for tpu_custom_call.1']
    #allocation12 [shape = 'u8[8192]{0}', space=vmem, size = 0x2000, scoped, tag = 'input window, operand 6']
    #allocation13 [shape = 'u8[8192]{0}', space=vmem, size = 0x2000, scoped, tag = 'input window, operand 8']
    #allocation14 [shape = 's32[2]{0}', space=sflag, size = 0x8, scoped, tag = 'scoped memory for tpu_custom_call.1']
    #allocation15 [shape = 'u8[8192]{0}', space=vmem, size = 0x2000, scoped, tag = 'input window, operand 9']
    %18 = vsyncpa [#allocation3], 0
    %s19 = scalar_lea.sflag [#allocation3], 1
    %20 = vsyncpa %s19, 0
    %21 = vsyncpa [#allocation5], 0
    %s22 = scalar_lea.sflag [#allocation5], 1
    %23 = vsyncpa %s22, 0
    %24 = vsyncpa [#allocation8], 0
    %s25 = scalar_lea.sflag [#allocation8], 1
    %26 = vsyncpa %s25, 0
    %27 = vsyncpa [#allocation11], 0
    %s28 = scalar_lea.sflag [#allocation11], 1
    %29 = vsyncpa %s28, 0
    %30 = vsyncpa [#allocation14], 0
    %s31 = scalar_lea.sflag [#allocation14], 1
    %32 = vsyncpa %s31, 0
    loop: start=0, step=1, limit=5
    $region2: #{tpu_custom_call.1} parent=1 // loop_pre_header
      _
    $region3: #{tpu_custom_call.1} parent=1 // loop_header
      %s34 = sphi 0, %s38
      %p35 = scmp.ge.s32.totalorder %s34, 5
      %s44 = sphi 0, %s46
      %s47 = sphi 0, %s44
      %s48 = sphi 0, %s47
      %s64 = sphi 0, %s48
      %s70 = sphi 0, %s72
      %s73 = sphi 0, %s70
      %s74 = sphi 0, %s73
      %s90 = sphi 0, %s74
      %s96 = sphi 0, %s98
      %s99 = sphi 0, %s96
      %s100 = sphi 0, %s99
      %s116 = sphi 0, %s100
      %s122 = sphi 0, %s124
      %s125 = sphi 0, %s122
      %s126 = sphi 0, %s125
      %s142 = sphi 0, %s126
      %s148 = sphi 0, %s150
      %s151 = sphi 0, %s148
      %s152 = sphi 0, %s151
      %s168 = sphi 0, %s152
      %s174 = sphi 0, %s176
      %s177 = sphi 0, %s174
      %s178 = sphi 0, %s177
      %s194 = sphi 0, %s178
      %s200 = sphi 0, %s202
      %s203 = sphi 0, %s200
      %s204 = sphi 0, %s203
      %s220 = sphi 0, %s204
      %s226 = sphi 0, %s228
      %s229 = sphi 0, %s226
      %s230 = sphi 0, %s229
      %s246 = sphi 0, %s230
      %s252 = sphi 0, %s254
      %s255 = sphi 0, %s252
      %s256 = sphi 0, %s255
      %s272 = sphi 0, %s256
      %s278 = sphi 0, %s280
      %s281 = sphi 0, %s278
      %s282 = sphi 0, %s281
      %s298 = sphi 0, %s282
      %s304 = sphi 0, %s306
      %s307 = sphi 0, %s304
      %s308 = sphi 0, %s307
      %s324 = sphi 0, %s308
      %s330 = sphi 0, %s332
      %s333 = sphi 0, %s330
      %s334 = sphi 0, %s333
      %s350 = sphi 0, %s334
      %s356 = sphi 0, %s358
      %s359 = sphi 0, %s356
      %s360 = sphi 0, %s359
      %s376 = sphi 0, %s360
    $region4: #{tpu_custom_call.1} parent=1 // loop_header_branch
      %37 = sbr.rel (%p35) target = $region8
    $region5: #{tpu_custom_call.1} parent=1 // loop_body
      %s39 = ssub.s32 %s34, 1
      %s40 = ssub.s32 %s34, 2
      %s41 = sadd.s32 %s34, 1
      %s42 = ssub.s32 %s34, %s41
      %p43 = scmp.eq.s32.totalorder %s42, 0
      %s45 = sadd.s32 %s44, 1
      %s46 = scalar_select %p43, %s44, %s45
      %p49 = pneg %p43
      %p50 = scmp.eq.s32.totalorder %s34, 2
      %p51 = por %p49, %p50
      %p52 = scmp.ne.s32.totalorder %s44, %s47
      %p53 = scmp.eq.s32.totalorder %s34, 0
      %p54 = por %p52, %p53
      %p55 = scmp.ne.s32.totalorder %s44, %s47
      %p56 = scmp.eq.s32.totalorder %s39, 2
      %p57 = por %p55, %p56
      %p58 = scmp.ne.s32.totalorder %s47, %s48
      %p59 = scmp.eq.s32.totalorder %s39, 0
      %p60 = por %p58, %p59
      %p61 = scmp.ne.s32.totalorder %s47, %s48
      %p62 = scmp.eq.s32.totalorder %s40, 2
      %p63 = por %p61, %p62
      %p65 = scmp.ne.s32.totalorder %s48, %s64
      %p66 = scmp.eq.s32.totalorder %s40, 0
      %p67 = por %p65, %p66
      %s68 = ssub.s32 %s34, %s41
      %p69 = scmp.eq.s32.totalorder %s68, 0
      %s71 = sadd.s32 %s70, 1
      %s72 = scalar_select %p69, %s70, %s71
      %p75 = pneg %p69
      %p76 = scmp.eq.s32.totalorder %s34, 2
      %p77 = por %p75, %p76
      %p78 = scmp.ne.s32.totalorder %s70, %s73
      %p79 = scmp.eq.s32.totalorder %s34, 0
      %p80 = por %p78, %p79
      %p81 = scmp.ne.s32.totalorder %s70, %s73
      %p82 = scmp.eq.s32.totalorder %s39, 2
      %p83 = por %p81, %p82
      %p84 = scmp.ne.s32.totalorder %s73, %s74
      %p85 = scmp.eq.s32.totalorder %s39, 0
      %p86 = por %p84, %p85
      %p87 = scmp.ne.s32.totalorder %s73, %s74
      %p88 = scmp.eq.s32.totalorder %s40, 2
      %p89 = por %p87, %p88
      %p91 = scmp.ne.s32.totalorder %s74, %s90
      %p92 = scmp.eq.s32.totalorder %s40, 0
      %p93 = por %p91, %p92
      %s94 = ssub.s32 %s34, %s41
      %p95 = scmp.eq.s32.totalorder %s94, 0
      %s97 = sadd.s32 %s96, 1
      %s98 = scalar_select %p95, %s96, %s97
      %p101 = pneg %p95
      %p102 = scmp.eq.s32.totalorder %s34, 2
      %p103 = por %p101, %p102
      %p104 = scmp.ne.s32.totalorder %s96, %s99
      %p105 = scmp.eq.s32.totalorder %s34, 0
      %p106 = por %p104, %p105
      %p107 = scmp.ne.s32.totalorder %s96, %s99
      %p108 = scmp.eq.s32.totalorder %s39, 2
      %p109 = por %p107, %p108
      %p110 = scmp.ne.s32.totalorder %s99, %s100
      %p111 = scmp.eq.s32.totalorder %s39, 0
      %p112 = por %p110, %p111
      %p113 = scmp.ne.s32.totalorder %s99, %s100
      %p114 = scmp.eq.s32.totalorder %s40, 2
      %p115 = por %p113, %p114
      %p117 = scmp.ne.s32.totalorder %s100, %s116
      %p118 = scmp.eq.s32.totalorder %s40, 0
      %p119 = por %p117, %p118
      %s120 = ssub.s32 %s34, %s41
      %p121 = scmp.eq.s32.totalorder %s120, 0
      %s123 = sadd.s32 %s122, 1
      %s124 = scalar_select %p121, %s122, %s123
      %p127 = pneg %p121
      %p128 = scmp.eq.s32.totalorder %s34, 2
      %p129 = por %p127, %p128
      %p130 = scmp.ne.s32.totalorder %s122, %s125
      %p131 = scmp.eq.s32.totalorder %s34, 0
      %p132 = por %p130, %p131
      %p133 = scmp.ne.s32.totalorder %s122, %s125
      %p134 = scmp.eq.s32.totalorder %s39, 2
      %p135 = por %p133, %p134
      %p136 = scmp.ne.s32.totalorder %s125, %s126
      %p137 = scmp.eq.s32.totalorder %s39, 0
      %p138 = por %p136, %p137
      %p139 = scmp.ne.s32.totalorder %s125, %s126
      %p140 = scmp.eq.s32.totalorder %s40, 2
      %p141 = por %p139, %p140
      %p143 = scmp.ne.s32.totalorder %s126, %s142
      %p144 = scmp.eq.s32.totalorder %s40, 0
      %p145 = por %p143, %p144
      %s146 = ssub.s32 %s34, %s41
      %p147 = scmp.eq.s32.totalorder %s146, 0
      %s149 = sadd.s32 %s148, 1
      %s150 = scalar_select %p147, %s148, %s149
      %p153 = pneg %p147
      %p154 = scmp.eq.s32.totalorder %s34, 2
      %p155 = por %p153, %p154
      %p156 = scmp.ne.s32.totalorder %s148, %s151
      %p157 = scmp.eq.s32.totalorder %s34, 0
      %p158 = por %p156, %p157
      %p159 = scmp.ne.s32.totalorder %s148, %s151
      %p160 = scmp.eq.s32.totalorder %s39, 2
      %p161 = por %p159, %p160
      %p162 = scmp.ne.s32.totalorder %s151, %s152
      %p163 = scmp.eq.s32.totalorder %s39, 0
      %p164 = por %p162, %p163
      %p165 = scmp.ne.s32.totalorder %s151, %s152
      %p166 = scmp.eq.s32.totalorder %s40, 2
      %p167 = por %p165, %p166
      %p169 = scmp.ne.s32.totalorder %s152, %s168
      %p170 = scmp.eq.s32.totalorder %s40, 0
      %p171 = por %p169, %p170
      %s172 = ssub.s32 %s34, %s41
      %p173 = scmp.eq.s32.totalorder %s172, 0
      %s175 = sadd.s32 %s174, 1
      %s176 = scalar_select %p173, %s174, %s175
      %p179 = pneg %p173
      %p180 = scmp.eq.s32.totalorder %s34, 2
      %p181 = por %p179, %p180
      %p182 = scmp.ne.s32.totalorder %s174, %s177
      %p183 = scmp.eq.s32.totalorder %s34, 0
      %p184 = por %p182, %p183
      %p185 = scmp.ne.s32.totalorder %s174, %s177
      %p186 = scmp.eq.s32.totalorder %s39, 2
      %p187 = por %p185, %p186
      %p188 = scmp.ne.s32.totalorder %s177, %s178
      %p189 = scmp.eq.s32.totalorder %s39, 0
      %p190 = por %p188, %p189
      %p191 = scmp.ne.s32.totalorder %s177, %s178
      %p192 = scmp.eq.s32.totalorder %s40, 2
      %p193 = por %p191, %p192
      %p195 = scmp.ne.s32.totalorder %s178, %s194
      %p196 = scmp.eq.s32.totalorder %s40, 0
      %p197 = por %p195, %p196
      %s198 = ssub.s32 %s34, %s41
      %p199 = scmp.eq.s32.totalorder %s198, 0
      %s201 = sadd.s32 %s200, 1
      %s202 = scalar_select %p199, %s200, %s201
      %p205 = pneg %p199
      %p206 = scmp.eq.s32.totalorder %s34, 2
      %p207 = por %p205, %p206
      %p208 = scmp.ne.s32.totalorder %s200, %s203
      %p209 = scmp.eq.s32.totalorder %s34, 0
      %p210 = por %p208, %p209
      %p211 = scmp.ne.s32.totalorder %s200, %s203
      %p212 = scmp.eq.s32.totalorder %s39, 2
      %p213 = por %p211, %p212
      %p214 = scmp.ne.s32.totalorder %s203, %s204
      %p215 = scmp.eq.s32.totalorder %s39, 0
      %p216 = por %p214, %p215
      %p217 = scmp.ne.s32.totalorder %s203, %s204
      %p218 = scmp.eq.s32.totalorder %s40, 2
      %p219 = por %p217, %p218
      %p221 = scmp.ne.s32.totalorder %s204, %s220
      %p222 = scmp.eq.s32.totalorder %s40, 0
      %p223 = por %p221, %p222
      %s224 = ssub.s32 %s34, %s41
      %p225 = scmp.eq.s32.totalorder %s224, 0
      %s227 = sadd.s32 %s226, 1
      %s228 = scalar_select %p225, %s226, %s227
      %p231 = pneg %p225
      %p232 = scmp.eq.s32.totalorder %s34, 2
      %p233 = por %p231, %p232
      %p234 = scmp.ne.s32.totalorder %s226, %s229
      %p235 = scmp.eq.s32.totalorder %s34, 0
      %p236 = por %p234, %p235
      %p237 = scmp.ne.s32.totalorder %s226, %s229
      %p238 = scmp.eq.s32.totalorder %s39, 2
      %p239 = por %p237, %p238
      %p240 = scmp.ne.s32.totalorder %s229, %s230
      %p241 = scmp.eq.s32.totalorder %s39, 0
      %p242 = por %p240, %p241
      %p243 = scmp.ne.s32.totalorder %s229, %s230
      %p244 = scmp.eq.s32.totalorder %s40, 2
      %p245 = por %p243, %p244
      %p247 = scmp.ne.s32.totalorder %s230, %s246
      %p248 = scmp.eq.s32.totalorder %s40, 0
      %p249 = por %p247, %p248
      %s250 = ssub.s32 %s34, %s41
      %p251 = scmp.eq.s32.totalorder %s250, 0
      %s253 = sadd.s32 %s252, 1
      %s254 = scalar_select %p251, %s252, %s253
      %p257 = pneg %p251
      %p258 = scmp.eq.s32.totalorder %s34, 2
      %p259 = por %p257, %p258
      %p260 = scmp.ne.s32.totalorder %s252, %s255
      %p261 = scmp.eq.s32.totalorder %s34, 0
      %p262 = por %p260, %p261
      %p263 = scmp.ne.s32.totalorder %s252, %s255
      %p264 = scmp.eq.s32.totalorder %s39, 2
      %p265 = por %p263, %p264
      %p266 = scmp.ne.s32.totalorder %s255, %s256
      %p267 = scmp.eq.s32.totalorder %s39, 0
      %p268 = por %p266, %p267
      %p269 = scmp.ne.s32.totalorder %s255, %s256
      %p270 = scmp.eq.s32.totalorder %s40, 2
      %p271 = por %p269, %p270
      %p273 = scmp.ne.s32.totalorder %s256, %s272
      %p274 = scmp.eq.s32.totalorder %s40, 0
      %p275 = por %p273, %p274
      %s276 = ssub.s32 %s34, %s41
      %p277 = scmp.eq.s32.totalorder %s276, 0
      %s279 = sadd.s32 %s278, 1
      %s280 = scalar_select %p277, %s278, %s279
      %p283 = pneg %p277
      %p284 = scmp.eq.s32.totalorder %s34, 2
      %p285 = por %p283, %p284
      %p286 = scmp.ne.s32.totalorder %s278, %s281
      %p287 = scmp.eq.s32.totalorder %s34, 0
      %p288 = por %p286, %p287
      %p289 = scmp.ne.s32.totalorder %s278, %s281
      %p290 = scmp.eq.s32.totalorder %s39, 2
      %p291 = por %p289, %p290
      %p292 = scmp.ne.s32.totalorder %s281, %s282
      %p293 = scmp.eq.s32.totalorder %s39, 0
      %p294 = por %p292, %p293
      %p295 = scmp.ne.s32.totalorder %s281, %s282
      %p296 = scmp.eq.s32.totalorder %s40, 2
      %p297 = por %p295, %p296
      %p299 = scmp.ne.s32.totalorder %s282, %s298
      %p300 = scmp.eq.s32.totalorder %s40, 0
      %p301 = por %p299, %p300
      %s302 = ssub.s32 %s34, %s41
      %p303 = scmp.eq.s32.totalorder %s302, 0
      %s305 = sadd.s32 %s304, 1
      %s306 = scalar_select %p303, %s304, %s305
      %p309 = pneg %p303
      %p310 = scmp.eq.s32.totalorder %s34, 2
      %p311 = por %p309, %p310
      %p312 = scmp.ne.s32.totalorder %s304, %s307
      %p313 = scmp.eq.s32.totalorder %s34, 0
      %p314 = por %p312, %p313
      %p315 = scmp.ne.s32.totalorder %s304, %s307
      %p316 = scmp.eq.s32.totalorder %s39, 2
      %p317 = por %p315, %p316
      %p318 = scmp.ne.s32.totalorder %s307, %s308
      %p319 = scmp.eq.s32.totalorder %s39, 0
      %p320 = por %p318, %p319
      %p321 = scmp.ne.s32.totalorder %s307, %s308
      %p322 = scmp.eq.s32.totalorder %s40, 2
      %p323 = por %p321, %p322
      %p325 = scmp.ne.s32.totalorder %s308, %s324
      %p326 = scmp.eq.s32.totalorder %s40, 0
      %p327 = por %p325, %p326
      %s328 = ssub.s32 %s34, %s41
      %p329 = scmp.eq.s32.totalorder %s328, 0
      %s331 = sadd.s32 %s330, 1
      %s332 = scalar_select %p329, %s330, %s331
      %p335 = pneg %p329
      %p336 = scmp.eq.s32.totalorder %s34, 2
      %p337 = por %p335, %p336
      %p338 = scmp.ne.s32.totalorder %s330, %s333
      %p339 = scmp.eq.s32.totalorder %s34, 0
      %p340 = por %p338, %p339
      %p341 = scmp.ne.s32.totalorder %s330, %s333
      %p342 = scmp.eq.s32.totalorder %s39, 2
      %p343 = por %p341, %p342
      %p344 = scmp.ne.s32.totalorder %s333, %s334
      %p345 = scmp.eq.s32.totalorder %s39, 0
      %p346 = por %p344, %p345
      %p347 = scmp.ne.s32.totalorder %s333, %s334
      %p348 = scmp.eq.s32.totalorder %s40, 2
      %p349 = por %p347, %p348
      %p351 = scmp.ne.s32.totalorder %s334, %s350
      %p352 = scmp.eq.s32.totalorder %s40, 0
      %p353 = por %p351, %p352
      %s354 = ssub.s32 %s34, %s41
      %p355 = scmp.eq.s32.totalorder %s354, 0
      %s357 = sadd.s32 %s356, 1
      %s358 = scalar_select %p355, %s356, %s357
      %p361 = pneg %p355
      %p362 = scmp.eq.s32.totalorder %s34, 2
      %p363 = por %p361, %p362
      %p364 = scmp.ne.s32.totalorder %s356, %s359
      %p365 = scmp.eq.s32.totalorder %s34, 0
      %p366 = por %p364, %p365
      %p367 = scmp.ne.s32.totalorder %s356, %s359
      %p368 = scmp.eq.s32.totalorder %s39, 2
      %p369 = por %p367, %p368
      %p370 = scmp.ne.s32.totalorder %s359, %s360
      %p371 = scmp.eq.s32.totalorder %s39, 0
      %p372 = por %p370, %p371
      %p373 = scmp.ne.s32.totalorder %s359, %s360
      %p374 = scmp.eq.s32.totalorder %s40, 2
      %p375 = por %p373, %p374
      %p377 = scmp.ne.s32.totalorder %s360, %s376
      %p378 = scmp.eq.s32.totalorder %s40, 0
      %p379 = por %p377, %p378
      %p380 = scmp.le.s32.totalorder 1, %s34
      %p381 = scmp.lt.s32.totalorder %s34, 4
      %p382 = pnand %p380, %p381
      %p383 = pneg %p382
      // Predicated region
      $region9: #{tpu_custom_call.1} parent=5 // pred_check
        _
      $region10: #{tpu_custom_call.1} parent=5 // pred_check_branch
        %385 = sbr.rel (%p382) target = $region12
      $region11: #{tpu_custom_call.1} parent=5 // pred_region
        %s386 = ssub.s32 %s34, 1
      $region12: #{tpu_custom_call.1} parent=5 // pred_fallthru
        _
      %p387 = scmp.lt.s32.totalorder %s34, 3
      // Predicated region
      $region13: #{tpu_custom_call.1} parent=5 // pred_check
        %p388 = pneg %p387
      $region14: #{tpu_custom_call.1} parent=5 // pred_check_branch
        %390 = sbr.rel (%p388) target = $region16
      $region15: #{tpu_custom_call.1} parent=5 // pred_region
        // Predicated region
        $region17: #{tpu_custom_call.1} parent=15 // pred_check
          %p391 = pneg %p54
        $region18: #{tpu_custom_call.1} parent=15 // pred_check_branch
          %393 = sbr.rel (%p391) target = $region20
        $region19: #{tpu_custom_call.1} parent=15 // pred_region
          %s394 = sand.u32 %s44, 1
          %s395 = scalar_lea.sflag [#allocation3], %s394
          %s396 = sand.u32 %s44, 1
          %s397 = smul.addr %s396, 8
          %s398 = scalar_lea.vmem [#allocation2], %s397
          %s400 = ssub.s32 128, 128
          %401 = vsyncadd %s395, %s400
          %s402 = smul.addr %s34, 128
          %s403 = scalar_lea.hbm %s0, %s402
          %s405 = sshll.u32 %s398, 4
          %s406 = int_to_ptr.vmem [resolvable:$true] %s405
          %408 = dma.hbm_to_vmem [thread:$0]  %s403, 128, %s406, %s395
        $region20: #{tpu_custom_call.1} parent=15 // pred_fallthru
          _
        // Predicated region
        $region21: #{tpu_custom_call.1} parent=15 // pred_check
          %p409 = pneg %p80
        $region22: #{tpu_custom_call.1} parent=15 // pred_check_branch
          %411 = sbr.rel (%p409) target = $region24
        $region23: #{tpu_custom_call.1} parent=15 // pred_region
          %s412 = sand.u32 %s34, 1
          %s413 = scalar_lea.sflag [#allocation5], %s412
          %s414 = sand.u32 %s70, 1
          %s415 = smul.addr %s414, 8
          %s416 = scalar_lea.vmem [#allocation4], %s415
          %s418 = ssub.s32 128, 128
          %419 = vsyncadd %s413, %s418
          %s420 = smul.addr %s34, 128
          %s421 = scalar_lea.hbm %s1, %s420
          %s423 = sshll.u32 %s416, 4
          %s424 = int_to_ptr.vmem [resolvable:$true] %s423
          %426 = dma.hbm_to_vmem [thread:$0]  %s421, 128, %s424, %s413
        $region24: #{tpu_custom_call.1} parent=15 // pred_fallthru
          _
        // Predicated region
        $region25: #{tpu_custom_call.1} parent=15 // pred_check
          %p427 = pneg %p106
        $region26: #{tpu_custom_call.1} parent=15 // pred_check_branch
          %429 = sbr.rel (%p427) target = $region28
        $region27: #{tpu_custom_call.1} parent=15 // pred_region
          %s430 = sand.u32 %s34, 1
          %s431 = scalar_lea.sflag [#allocation5], %s430
          %s432 = sand.u32 %s96, 1
          %s433 = smul.addr %s432, 8
          %s434 = scalar_lea.vmem [#allocation6], %s433
          %s436 = ssub.s32 128, 128
          %437 = vsyncadd %s431, %s436
          %s438 = smul.addr %s34, 128
          %s439 = scalar_lea.hbm %s2, %s438
          %s441 = sshll.u32 %s434, 4
          %s442 = int_to_ptr.vmem [resolvable:$true] %s441
          %444 = dma.hbm_to_vmem [thread:$0]  %s439, 128, %s442, %s431
        $region28: #{tpu_custom_call.1} parent=15 // pred_fallthru
          _
        // Predicated region
        $region29: #{tpu_custom_call.1} parent=15 // pred_check
          %p445 = pneg %p132
        $region30: #{tpu_custom_call.1} parent=15 // pred_check_branch
          %447 = sbr.rel (%p445) target = $region32
        $region31: #{tpu_custom_call.1} parent=15 // pred_region
          %s448 = sand.u32 %s34, 1
          %s449 = scalar_lea.sflag [#allocation8], %s448
          %s450 = sand.u32 %s122, 1
          %s451 = smul.addr %s450, 8
          %s452 = scalar_lea.vmem [#allocation7], %s451
          %s454 = ssub.s32 128, 128
          %455 = vsyncadd %s449, %s454
          %s456 = smul.addr %s34, 128
          %s457 = scalar_lea.hbm %s3, %s456
          %s459 = sshll.u32 %s452, 4
          %s460 = int_to_ptr.vmem [resolvable:$true] %s459
          %462 = dma.hbm_to_vmem [thread:$0]  %s457, 128, %s460, %s449
        $region32: #{tpu_custom_call.1} parent=15 // pred_fallthru
          _
        // Predicated region
        $region33: #{tpu_custom_call.1} parent=15 // pred_check
          %p463 = pneg %p158
        $region34: #{tpu_custom_call.1} parent=15 // pred_check_branch
          %465 = sbr.rel (%p463) target = $region36
        $region35: #{tpu_custom_call.1} parent=15 // pred_region
          %s466 = sand.u32 %s34, 1
          %s467 = scalar_lea.sflag [#allocation8], %s466
          %s468 = sand.u32 %s148, 1
          %s469 = smul.addr %s468, 8
          %s470 = scalar_lea.vmem [#allocation9], %s469
          %s472 = ssub.s32 128, 128
          %473 = vsyncadd %s467, %s472
          %s474 = smul.addr %s34, 128
          %s475 = scalar_lea.hbm %s4, %s474
          %s477 = sshll.u32 %s470, 4
          %s478 = int_to_ptr.vmem [resolvable:$true] %s477
          %480 = dma.hbm_to_vmem [thread:$0]  %s475, 128, %s478, %s467
        $region36: #{tpu_custom_call.1} parent=15 // pred_fallthru
          _
        // Predicated region
        $region37: #{tpu_custom_call.1} parent=15 // pred_check
          %p481 = pneg %p184
        $region38: #{tpu_custom_call.1} parent=15 // pred_check_branch
          %483 = sbr.rel (%p481) target = $region40
        $region39: #{tpu_custom_call.1} parent=15 // pred_region
          %s484 = sand.u32 %s34, 1
          %s485 = scalar_lea.sflag [#allocation11], %s484
          %s486 = sand.u32 %s174, 1
          %s487 = smul.addr %s486, 8
          %s488 = scalar_lea.vmem [#allocation10], %s487
          %s490 = ssub.s32 128, 128
          %491 = vsyncadd %s485, %s490
          %s492 = smul.addr %s34, 128
          %s493 = scalar_lea.hbm %s5, %s492
          %s495 = sshll.u32 %s488, 4
          %s496 = int_to_ptr.vmem [resolvable:$true] %s495
          %498 = dma.hbm_to_vmem [thread:$0]  %s493, 128, %s496, %s485
        $region40: #{tpu_custom_call.1} parent=15 // pred_fallthru
          _
        // Predicated region
        $region41: #{tpu_custom_call.1} parent=15 // pred_check
          %p499 = pneg %p210
        $region42: #{tpu_custom_call.1} parent=15 // pred_check_branch
          %501 = sbr.rel (%p499) target = $region44
        $region43: #{tpu_custom_call.1} parent=15 // pred_region
          %s502 = sand.u32 %s34, 1
          %s503 = scalar_lea.sflag [#allocation11], %s502
          %s504 = sand.u32 %s200, 1
          %s505 = smul.addr %s504, 8
          %s506 = scalar_lea.vmem [#allocation12], %s505
          %s508 = ssub.s32 128, 128
          %509 = vsyncadd %s503, %s508
          %s510 = smul.addr %s34, 128
          %s511 = scalar_lea.hbm %s6, %s510
          %s513 = sshll.u32 %s506, 4
          %s514 = int_to_ptr.vmem [resolvable:$true] %s513
          %516 = dma.hbm_to_vmem [thread:$0]  %s511, 128, %s514, %s503
        $region44: #{tpu_custom_call.1} parent=15 // pred_fallthru
          _
        // Predicated region
        $region45: #{tpu_custom_call.1} parent=15 // pred_check
          %p517 = pneg %p236
        $region46: #{tpu_custom_call.1} parent=15 // pred_check_branch
          %519 = sbr.rel (%p517) target = $region48
        $region47: #{tpu_custom_call.1} parent=15 // pred_region
          %p520 = scmp.lt.s32.totalorder %s34, 2
          %s521 = scalar_select %p520, %s34, 2
          %s522 = smul.addr %s521, 8
          %s523 = scalar_lea.vmem %s7, %s522
        $region48: #{tpu_custom_call.1} parent=15 // pred_fallthru
          _
        // Predicated region
        $region49: #{tpu_custom_call.1} parent=15 // pred_check
          %p524 = pneg %p262
        $region50: #{tpu_custom_call.1} parent=15 // pred_check_branch
          %526 = sbr.rel (%p524) target = $region52
        $region51: #{tpu_custom_call.1} parent=15 // pred_region
          %s527 = sand.u32 %s34, 1
          %s528 = scalar_lea.sflag [#allocation14], %s527
          %s529 = sand.u32 %s252, 1
          %s530 = smul.addr %s529, 8
          %s531 = scalar_lea.vmem [#allocation13], %s530
          %s533 = ssub.s32 128, 128
          %534 = vsyncadd %s528, %s533
          %s535 = smul.addr %s34, 128
          %s536 = scalar_lea.hbm %s8, %s535
          %s538 = sshll.u32 %s531, 4
          %s539 = int_to_ptr.vmem [resolvable:$true] %s538
          %541 = dma.hbm_to_vmem [thread:$0]  %s536, 128, %s539, %s528
        $region52: #{tpu_custom_call.1} parent=15 // pred_fallthru
          _
        // Predicated region
        $region53: #{tpu_custom_call.1} parent=15 // pred_check
          %p542 = pneg %p288
        $region54: #{tpu_custom_call.1} parent=15 // pred_check_branch
          %544 = sbr.rel (%p542) target = $region56
        $region55: #{tpu_custom_call.1} parent=15 // pred_region
          %s545 = sand.u32 %s34, 1
          %s546 = scalar_lea.sflag [#allocation14], %s545
          %s547 = sand.u32 %s278, 1
          %s548 = smul.addr %s547, 8
          %s549 = scalar_lea.vmem [#allocation15], %s548
          %s551 = ssub.s32 128, 128
          %552 = vsyncadd %s546, %s551
          %s553 = smul.addr %s34, 128
          %s554 = scalar_lea.hbm %s9, %s553
          %s556 = sshll.u32 %s549, 4
          %s557 = int_to_ptr.vmem [resolvable:$true] %s556
          %559 = dma.hbm_to_vmem [thread:$0]  %s554, 128, %s557, %s546
        $region56: #{tpu_custom_call.1} parent=15 // pred_fallthru
          _
      $region16: #{tpu_custom_call.1} parent=5 // pred_fallthru
        _
      %p560 = scmp.le.s32.totalorder 1, %s34
      %p561 = scmp.lt.s32.totalorder %s34, 4
      %p562 = pnand %p560, %p561
      %p563 = pneg %p562
      // Predicated region
      $region57: #{tpu_custom_call.1} parent=5 // pred_check
        _
      $region58: #{tpu_custom_call.1} parent=5 // pred_check_branch
        %565 = sbr.rel (%p562) target = $region60
      $region59: #{tpu_custom_call.1} parent=5 // pred_region
        %s566 = ssub.s32 %s34, 1
        %s567 = sand.u32 %s47, 1
        %s568 = scalar_lea.sflag [#allocation3], %s567
        %s569 = sand.u32 %s47, 1
        %s570 = smul.addr %s569, 8
        %s571 = scalar_lea.vmem [#allocation2], %s570
        // Predicated region
        $region61: #{tpu_custom_call.1} parent=59 // pred_check
          %p572 = pneg %p60
        $region62: #{tpu_custom_call.1} parent=59 // pred_check_branch
          %574 = sbr.rel (%p572) target = $region64
        $region63: #{tpu_custom_call.1} parent=59 // pred_region
          %575 = dma.done %s568, 128
        $region64: #{tpu_custom_call.1} parent=59 // pred_fallthru
          _
        %s576 = sand.u32 %s39, 1
        %s577 = scalar_lea.sflag [#allocation5], %s576
        %s578 = sand.u32 %s73, 1
        %s579 = smul.addr %s578, 8
        %s580 = scalar_lea.vmem [#allocation4], %s579
        // Predicated region
        $region65: #{tpu_custom_call.1} parent=59 // pred_check
          %p581 = pneg %p86
        $region66: #{tpu_custom_call.1} parent=59 // pred_check_branch
          %583 = sbr.rel (%p581) target = $region68
        $region67: #{tpu_custom_call.1} parent=59 // pred_region
          %584 = dma.done %s577, 128
        $region68: #{tpu_custom_call.1} parent=59 // pred_fallthru
          _
        %s585 = sand.u32 %s39, 1
        %s586 = scalar_lea.sflag [#allocation5], %s585
        %s587 = sand.u32 %s99, 1
        %s588 = smul.addr %s587, 8
        %s589 = scalar_lea.vmem [#allocation6], %s588
        // Predicated region
        $region69: #{tpu_custom_call.1} parent=59 // pred_check
          %p590 = pneg %p112
        $region70: #{tpu_custom_call.1} parent=59 // pred_check_branch
          %592 = sbr.rel (%p590) target = $region72
        $region71: #{tpu_custom_call.1} parent=59 // pred_region
          %593 = dma.done %s586, 128
        $region72: #{tpu_custom_call.1} parent=59 // pred_fallthru
          _
        %s594 = sand.u32 %s39, 1
        %s595 = scalar_lea.sflag [#allocation8], %s594
        %s596 = sand.u32 %s125, 1
        %s597 = smul.addr %s596, 8
        %s598 = scalar_lea.vmem [#allocation7], %s597
        // Predicated region
        $region73: #{tpu_custom_call.1} parent=59 // pred_check
          %p599 = pneg %p138
        $region74: #{tpu_custom_call.1} parent=59 // pred_check_branch
          %601 = sbr.rel (%p599) target = $region76
        $region75: #{tpu_custom_call.1} parent=59 // pred_region
          %602 = dma.done %s595, 128
        $region76: #{tpu_custom_call.1} parent=59 // pred_fallthru
          _
        %s603 = sand.u32 %s39, 1
        %s604 = scalar_lea.sflag [#allocation8], %s603
        %s605 = sand.u32 %s151, 1
        %s606 = smul.addr %s605, 8
        %s607 = scalar_lea.vmem [#allocation9], %s606
        // Predicated region
        $region77: #{tpu_custom_call.1} parent=59 // pred_check
          %p608 = pneg %p164
        $region78: #{tpu_custom_call.1} parent=59 // pred_check_branch
          %610 = sbr.rel (%p608) target = $region80
        $region79: #{tpu_custom_call.1} parent=59 // pred_region
          %611 = dma.done %s604, 128
        $region80: #{tpu_custom_call.1} parent=59 // pred_fallthru
          _
        %s612 = sand.u32 %s39, 1
        %s613 = scalar_lea.sflag [#allocation11], %s612
        %s614 = sand.u32 %s177, 1
        %s615 = smul.addr %s614, 8
        %s616 = scalar_lea.vmem [#allocation10], %s615
        // Predicated region
        $region81: #{tpu_custom_call.1} parent=59 // pred_check
          %p617 = pneg %p190
        $region82: #{tpu_custom_call.1} parent=59 // pred_check_branch
          %619 = sbr.rel (%p617) target = $region84
        $region83: #{tpu_custom_call.1} parent=59 // pred_region
          %620 = dma.done %s613, 128
        $region84: #{tpu_custom_call.1} parent=59 // pred_fallthru
          _
        %s621 = sand.u32 %s39, 1
        %s622 = scalar_lea.sflag [#allocation11], %s621
        %s623 = sand.u32 %s203, 1
        %s624 = smul.addr %s623, 8
        %s625 = scalar_lea.vmem [#allocation12], %s624
        // Predicated region
        $region85: #{tpu_custom_call.1} parent=59 // pred_check
          %p626 = pneg %p216
        $region86: #{tpu_custom_call.1} parent=59 // pred_check_branch
          %628 = sbr.rel (%p626) target = $region88
        $region87: #{tpu_custom_call.1} parent=59 // pred_region
          %629 = dma.done %s622, 128
        $region88: #{tpu_custom_call.1} parent=59 // pred_fallthru
          _
        %s630 = sand.u32 %s39, 1
        %s631 = scalar_lea.sflag [#allocation14], %s630
        %s632 = sand.u32 %s255, 1
        %s633 = smul.addr %s632, 8
        %s634 = scalar_lea.vmem [#allocation13], %s633
        // Predicated region
        $region89: #{tpu_custom_call.1} parent=59 // pred_check
          %p635 = pneg %p268
        $region90: #{tpu_custom_call.1} parent=59 // pred_check_branch
          %637 = sbr.rel (%p635) target = $region92
        $region91: #{tpu_custom_call.1} parent=59 // pred_region
          %638 = dma.done %s631, 128
        $region92: #{tpu_custom_call.1} parent=59 // pred_fallthru
          _
        %s639 = sand.u32 %s39, 1
        %s640 = scalar_lea.sflag [#allocation14], %s639
        %s641 = sand.u32 %s281, 1
        %s642 = smul.addr %s641, 8
        %s643 = scalar_lea.vmem [#allocation15], %s642
        // Predicated region
        $region93: #{tpu_custom_call.1} parent=59 // pred_check
          %p644 = pneg %p294
        $region94: #{tpu_custom_call.1} parent=59 // pred_check_branch
          %646 = sbr.rel (%p644) target = $region96
        $region95: #{tpu_custom_call.1} parent=59 // pred_region
          %647 = dma.done %s640, 128
        $region96: #{tpu_custom_call.1} parent=59 // pred_fallthru
          _
        %s648 = sand.u32 %s47, 1
        %s649 = scalar_lea.sflag [#allocation3], %s648
        %s650 = sand.u32 %s47, 1
        %s651 = smul.addr %s650, 8
        %s652 = scalar_lea.vmem [#allocation2], %s651
        %p653 = pneg %p60
        %p654 = pneg %p57
        %s655 = sand.u32 %s39, 1
        %s656 = scalar_lea.sflag [#allocation5], %s655
        %s657 = sand.u32 %s73, 1
        %s658 = smul.addr %s657, 8
        %s659 = scalar_lea.vmem [#allocation4], %s658
        %p660 = pneg %p86
        %p661 = pneg %p83
        %s662 = sand.u32 %s39, 1
        %s663 = scalar_lea.sflag [#allocation5], %s662
        %s664 = sand.u32 %s99, 1
        %s665 = smul.addr %s664, 8
        %s666 = scalar_lea.vmem [#allocation6], %s665
        %p667 = pneg %p112
        %p668 = pneg %p109
        %s669 = sand.u32 %s39, 1
        %s670 = scalar_lea.sflag [#allocation8], %s669
        %s671 = sand.u32 %s125, 1
        %s672 = smul.addr %s671, 8
        %s673 = scalar_lea.vmem [#allocation7], %s672
        %p674 = pneg %p138
        %p675 = pneg %p135
        %s676 = sand.u32 %s39, 1
        %s677 = scalar_lea.sflag [#allocation8], %s676
        %s678 = sand.u32 %s151, 1
        %s679 = smul.addr %s678, 8
        %s680 = scalar_lea.vmem [#allocation9], %s679
        %p681 = pneg %p164
        %p682 = pneg %p161
        %s683 = sand.u32 %s39, 1
        %s684 = scalar_lea.sflag [#allocation11], %s683
        %s685 = sand.u32 %s177, 1
        %s686 = smul.addr %s685, 8
        %s687 = scalar_lea.vmem [#allocation10], %s686
        %p688 = pneg %p190
        %p689 = pneg %p187
        %s690 = sand.u32 %s39, 1
        %s691 = scalar_lea.sflag [#allocation11], %s690
        %s692 = sand.u32 %s203, 1
        %s693 = smul.addr %s692, 8
        %s694 = scalar_lea.vmem [#allocation12], %s693
        %p695 = pneg %p216
        %p696 = pneg %p213
        %p697 = scmp.lt.s32.totalorder %s39, 2
        %s698 = scalar_select %p697, %s39, 2
        %s699 = smul.addr %s698, 8
        %s700 = scalar_lea.vmem %s7, %s699
        %p701 = pneg %p242
        %p702 = pneg %p239
        %s703 = sand.u32 %s39, 1
        %s704 = scalar_lea.sflag [#allocation14], %s703
        %s705 = sand.u32 %s255, 1
        %s706 = smul.addr %s705, 8
        %s707 = scalar_lea.vmem [#allocation13], %s706
        %p708 = pneg %p268
        %p709 = pneg %p265
        %s710 = sand.u32 %s39, 1
        %s711 = scalar_lea.sflag [#allocation14], %s710
        %s712 = sand.u32 %s281, 1
        %s713 = smul.addr %s712, 8
        %s714 = scalar_lea.vmem [#allocation15], %s713
        %p715 = pneg %p294
        %p716 = pneg %p291
        %p717 = pneg %p320
        %p718 = pneg %p317
        %p719 = scmp.lt.s32.totalorder %s39, 2
        %s720 = scalar_select %p719, %s39, 2
        %s721 = smul.addr %s720, 8
        %s722 = scalar_lea.vmem %s10, %s721
        %p723 = pneg %p346
        %p724 = pneg %p343
        %p725 = scmp.lt.s32.totalorder %s39, 2
        %s726 = scalar_select %p725, %s39, 2
        %s727 = smul.addr %s726, 8
        %s728 = scalar_lea.vmem %s11, %s727
        %p729 = pneg %p372
        %p730 = pneg %p369
        %p731 = scmp.lt.s32.totalorder %s39, 2
        %s732 = scalar_select %p731, %s39, 2
        %s733 = smul.addr %s732, 8
        %s734 = scalar_lea.vmem %s12, %s733
        %p735 = scmp.lt.s32.totalorder %s39, 2
        %s736 = scalar_select %p735, %s39, 2
        %s737 = smul.addr %s736, 8
        %s738 = scalar_lea.vmem %s7, %s737
        %p739 = scmp.lt.s32.totalorder %s39, 2
        %s740 = scalar_select %p739, %s39, 2
        %s741 = smul.addr %s740, 8
        %s742 = scalar_lea.vmem %s10, %s741
        %p743 = scmp.lt.s32.totalorder %s39, 2
        %s744 = scalar_select %p743, %s39, 2
        %s745 = smul.addr %s744, 8
        %s746 = scalar_lea.vmem %s11, %s745
        %p747 = scmp.lt.s32.totalorder %s39, 2
        %s748 = scalar_select %p747, %s39, 2
        %s749 = smul.addr %s748, 8
        %s750 = scalar_lea.vmem %s12, %s749
        %v751 = vld [vmem:[%s589] sm:$0xff]
        %v752 = vld [vmem:[%s598] sm:$0xff]
        %v753 = vld [vmem:[%s571] sm:$0xff]
        %v754 = vld [vmem:[%s580] sm:$0xff]
        %v755 = vld [vmem:[%s607] sm:$0xff]
        %v756 = vld [vmem:[%s616] sm:$0xff]
        %v757 = vmul.f32 %v753, %v751
        %v758 = vmul.f32 %v754, %v752
        %v759 = vsub.f32 %v757, %v758
        %v760 = vsub.f32 %v759, %v755
        %v761 = vmul.f32 %v753, %v752
        %v762 = vmul.f32 %v754, %v751
        %v763 = vadd.f32 %v761, %v762
        %v764 = vsub.f32 %v763, %v756
        %v765 = vmul.f32 %v760, %v760
        %v766 = vmul.f32 %v764, %v764
        %v767 = vadd.f32 %v765, %v766
        %vm768 = vcmask 261120
        %v769 = vsel %vm768, %v767, 0.0
        %770 = vadd.xlane.f32.xlu0 %v769
        %v771 = vpop.xlane.xlu0 %770
        %v772 = vrsqrt.pop %v771
        %v773 = vmul.f32 %v771, %v772
        %vm774 = vcmp.eq.f32.partialorder %v771, inf
        %v775 = vsel %vm774, %v771, %v773
        %vm776 = vcmp.eq.f32.partialorder %v771, 0.0
        %v777 = vand.u32 %v771, 2147483648
        %v778 = vsel %vm776, %v777, %v775
        %v779 = vld [vmem:[%s625] sm:$0xff]
        %v780 = vld [vmem:[%s738] sm:$0xff]
        %v781 = vld [vmem:[%s634] sm:$0xff]
        %v782 = vld [vmem:[%s643] sm:$0xff]
        %v783 = vmul.f32 %v779, %v751
        %v784 = vmul.f32 %v780, %v752
        %v785 = vsub.f32 %v783, %v784
        %v786 = vsub.f32 %v785, %v781
        %v787 = vmul.f32 %v779, %v752
        %v788 = vmul.f32 %v780, %v751
        %v789 = vadd.f32 %v787, %v788
        %v790 = vsub.f32 %v789, %v782
        %v791 = vmul.f32 %v786, %v786
        %v792 = vmul.f32 %v790, %v790
        %v793 = vadd.f32 %v791, %v792
        %v794 = vsel %vm768, %v793, 0.0
        %795 = vadd.xlane.f32.xlu0 %v794
        %v796 = vpop.xlane.xlu0 %795
        %v797 = vrsqrt.pop %v796
        %v798 = vmul.f32 %v796, %v797
        %vm799 = vcmp.eq.f32.partialorder %v796, inf
        %v800 = vsel %vm799, %v796, %v798
        %vm801 = vcmp.eq.f32.partialorder %v796, 0.0
        %v802 = vand.u32 %v796, 2147483648
        %v803 = vsel %vm801, %v802, %v800
        %vm804 = vcmask 7168
        %805 = vst.msk [vmem:[%s746] sm:$0xff] %vm804, %v778
        %806 = vst.msk [vmem:[%s750] sm:$0xff] %vm804, %v803
        %v807 = vsub.f32 %v778, %v803
        %v808 = vadd.f32 %v807, 1.0
        %v809 = vmax.f32 %v808, 0.0
        %810 = vst.msk [vmem:[%s742] sm:$0xff] %vm804, %v809
        %p811 = scmp.lt.s32.totalorder %s39, 2
        %s812 = scalar_select %p811, %s39, 2
        %s813 = smul.addr %s812, 8
        %s814 = scalar_lea.vmem %s10, %s813
        %p815 = scmp.lt.s32.totalorder %s39, 2
        %s816 = scalar_select %p815, %s39, 2
        %s817 = smul.addr %s816, 8
        %s818 = scalar_lea.vmem %s11, %s817
        %p819 = scmp.lt.s32.totalorder %s39, 2
        %s820 = scalar_select %p819, %s39, 2
        %s821 = smul.addr %s820, 8
        %s822 = scalar_lea.vmem %s12, %s821
        // Predicated region
        $region97: #{tpu_custom_call.1} parent=59 // pred_check
          %p823 = pneg %p317
        $region98: #{tpu_custom_call.1} parent=59 // pred_check_branch
          %825 = sbr.rel (%p823) target = $region100
        $region99: #{tpu_custom_call.1} parent=59 // pred_region
          _
        $region100: #{tpu_custom_call.1} parent=59 // pred_fallthru
          _
        // Predicated region
        $region101: #{tpu_custom_call.1} parent=59 // pred_check
          %p826 = pneg %p343
        $region102: #{tpu_custom_call.1} parent=59 // pred_check_branch
          %828 = sbr.rel (%p826) target = $region104
        $region103: #{tpu_custom_call.1} parent=59 // pred_region
          _
        $region104: #{tpu_custom_call.1} parent=59 // pred_fallthru
          _
        // Predicated region
        $region105: #{tpu_custom_call.1} parent=59 // pred_check
          %p829 = pneg %p369
        $region106: #{tpu_custom_call.1} parent=59 // pred_check_branch
          %831 = sbr.rel (%p829) target = $region108
        $region107: #{tpu_custom_call.1} parent=59 // pred_region
          _
        $region108: #{tpu_custom_call.1} parent=59 // pred_fallthru
          _
      $region60: #{tpu_custom_call.1} parent=5 // pred_fallthru
        _
      %p832 = scmp.le.s32.totalorder 2, %s34
      // Predicated region
      $region109: #{tpu_custom_call.1} parent=5 // pred_check
        %p833 = pneg %p832
      $region110: #{tpu_custom_call.1} parent=5 // pred_check_branch
        %835 = sbr.rel (%p833) target = $region112
      $region111: #{tpu_custom_call.1} parent=5 // pred_region
        %s836 = ssub.s32 %s34, 2
        // Predicated region
        $region113: #{tpu_custom_call.1} parent=111 // pred_check
          %p837 = pneg %p323
        $region114: #{tpu_custom_call.1} parent=111 // pred_check_branch
          %839 = sbr.rel (%p837) target = $region116
        $region115: #{tpu_custom_call.1} parent=111 // pred_region
          %p840 = scmp.lt.s32.totalorder %s40, 2
          %s841 = scalar_select %p840, %s40, 2
          %s842 = smul.addr %s841, 8
          %s843 = scalar_lea.vmem %s10, %s842
        $region116: #{tpu_custom_call.1} parent=111 // pred_fallthru
          _
        // Predicated region
        $region117: #{tpu_custom_call.1} parent=111 // pred_check
          %p844 = pneg %p349
        $region118: #{tpu_custom_call.1} parent=111 // pred_check_branch
          %846 = sbr.rel (%p844) target = $region120
        $region119: #{tpu_custom_call.1} parent=111 // pred_region
          %p847 = scmp.lt.s32.totalorder %s40, 2
          %s848 = scalar_select %p847, %s40, 2
          %s849 = smul.addr %s848, 8
          %s850 = scalar_lea.vmem %s11, %s849
        $region120: #{tpu_custom_call.1} parent=111 // pred_fallthru
          _
        // Predicated region
        $region121: #{tpu_custom_call.1} parent=111 // pred_check
          %p851 = pneg %p375
        $region122: #{tpu_custom_call.1} parent=111 // pred_check_branch
          %853 = sbr.rel (%p851) target = $region124
        $region123: #{tpu_custom_call.1} parent=111 // pred_region
          %p854 = scmp.lt.s32.totalorder %s40, 2
          %s855 = scalar_select %p854, %s40, 2
          %s856 = smul.addr %s855, 8
          %s857 = scalar_lea.vmem %s12, %s856
        $region124: #{tpu_custom_call.1} parent=111 // pred_fallthru
          _
      $region112: #{tpu_custom_call.1} parent=5 // pred_fallthru
        _
    $region6: #{tpu_custom_call.1} parent=1 // loop_footer
      %s38 = sadd.s32 1, %s34
    $region7: #{tpu_custom_call.1} parent=1 // loop_footer_branch
      %33 = sbr.rel target = $region3
    $region8: #{tpu_custom_call.1} parent=1 // loop_exit
      _
    %858 = vsyncpa [#allocation3], 1
    %s859 = scalar_lea.sflag [#allocation3], 1
    %860 = vsyncpa %s859, 1
    %861 = vsyncpa [#allocation5], 1
    %s862 = scalar_lea.sflag [#allocation5], 1
    %863 = vsyncpa %s862, 1
    %864 = vsyncpa [#allocation8], 1
    %s865 = scalar_lea.sflag [#allocation8], 1
    %866 = vsyncpa %s865, 1
    %867 = vsyncpa [#allocation11], 1
    %s868 = scalar_lea.sflag [#allocation11], 1
    %869 = vsyncpa %s868, 1
    %870 = vsyncpa [#allocation14], 1
    %s871 = scalar_lea.sflag [#allocation14], 1
    %872 = vsyncpa %s871, 1

</llo_original>
